<compile_context>
chip_gen: v7x
topology: tpu7x:2x2x1
jax: 0.10.0
libtpu: 0.0.40
codegen_flags: <defaults>
</compile_context>

<pallas_src>
import functools

import jax
import jax.numpy as jnp
from jax.experimental import pallas as pl
from jax.experimental.pallas import tpu as pltpu

LANE = 128
SUB = 8                          # f32 sublane tile; accumulator is (SUB, LANE)
CHUNK_ROWS = 512                 # per-chunk f32 temporaries: 512*128*4B = 256 KiB
DEFAULT_BLOCK_BYTES = 4 * 1024 * 1024   # 4 MiB input block (x2 double-buffered)


def _stable_bce_with_logits(x, t):
    """max(x,0) - x*t + log1p(exp(-|x|)) -- matches torch BCEWithLogitsLoss."""
    loss = jnp.maximum(x, 0.0) + jnp.log1p(jnp.exp(-jnp.abs(x)))
    if t != 0.0:                 # static Python check: fully folded when t == 0
        loss = loss - x * jnp.float32(t)
    return loss


def _bce_sum_kernel(x_ref, out_ref, *, t, rows, block_rows, chunk_rows,
                    blocks_per_core, num_blocks, num_cores):
    """Accumulate partial BCE-with-logits sums into an (8, 128) output block.

    All keyword args are static Python ints/floats.
    x_ref  : VMEM (block_rows, LANE) tile of logits (native dtype).
    out_ref: VMEM (SUB, LANE) f32 per-core accumulator (revisited across i).
    """
    c = pl.program_id(0)           # "parallel" axis (2-TC split on v7x)
    i = pl.program_id(1)           # "arbitrary" reduction axis
    g = c * blocks_per_core + i    # global (unclamped) block index

    @pl.when(i == 0)
    def _():
        out_ref[...] = jnp.zeros_like(out_ref)

    n_chunks = block_rows // chunk_rows

    def chunk_partial(j, valid_rows):
        start = j * chunk_rows
        x = x_ref[pl.ds(pl.multiple_of(start, chunk_rows), chunk_rows), :]
        loss = _stable_bce_with_logits(x.astype(jnp.float32), t)
        if valid_rows is not None:
            # Row-only mask (the <128-elem lane tail was peeled off in the
            # wrapper).  Per-block row indices stay far inside int32 for any
            # realistic n (rows = n / 128).  Select (not multiply) so garbage
            # from padded / clamped blocks can never leak into the sum.
            row_ids = jax.lax.broadcasted_iota(jnp.int32, (chunk_rows, LANE), 0)
            loss = jnp.where(start + row_ids < valid_rows, loss, 0.0)
        # (chunk_rows, LANE) -> (chunk_rows//SUB, SUB, LANE) is (8,128)-tile
        # aligned (free view); the axis-0 sum is pure VPU element-wise adds.
        return loss.reshape(chunk_rows // SUB, SUB, LANE).sum(axis=0)

    def accumulate(valid_rows):
        acc = jax.lax.fori_loop(
            0, n_chunks,
            lambda j, a: a + chunk_partial(j, valid_rows),
            jnp.zeros((SUB, LANE), jnp.float32),
            unroll=True)
        out_ref[...] += acc

    has_row_tail = (rows % block_rows) != 0
    has_phantom = blocks_per_core * num_cores > num_blocks
    if not (has_row_tail or has_phantom):
        accumulate(None)                 # fast path: no masking emitted at all
    else:
        first_masked = num_blocks - 1 if has_row_tail else num_blocks

        if first_masked > 0:
            @pl.when(g < first_masked)
            def _():
                accumulate(None)         # interior blocks: unmasked

        @pl.when(g >= first_masked)
        def _():
            # Rows remaining in this block; <= 0 for phantom blocks (whose
            # index_map is clamped), which masks everything to zero.
            accumulate(rows - g * block_rows)


@functools.partial(jax.jit, static_argnames=("is_real", "prob", "block_bytes"))
def bce_gan_loss(prediction, is_real: bool, prob: float = 0.5,
                 block_bytes: int = DEFAULT_BLOCK_BYTES):
    """Pallas equivalent of BCEGANLoss.forward(prediction, is_real, prob)."""
    # target = (ones if is_real else zeros) * prob  ->  static scalar target.
    t = float(prob) * (1.0 if is_real else 0.0)

    x = prediction.reshape(-1)
    n = x.shape[0]
    total = jnp.float32(0.0)

    # Ragged (<128 element) lane tail: fold in with plain jnp instead of a
    # full-array jnp.pad copy.
    n_prefix = (n // LANE) * LANE
    if n_prefix != n:
        tail = x[n_prefix:].astype(jnp.float32)
        total = total + jnp.sum(_stable_bce_with_logits(tail, t))

    rows = n_prefix // LANE
    if rows > 0:
        x2d = (x if n_prefix == n else x[:n_prefix]).reshape(rows, LANE)

        # --- block sizing: byte budget, rounded to the dtype sublane tile ----
        # 4 MiB blocks (x2 double-buffered) fit every generation's scoped VMEM
        # (v5e 16 MiB default, v6e/v7x 32 MiB), so one code path runs clean on
        # all chips while amortizing the ~0.35us per-grid-step overhead.
        itemsize = x2d.dtype.itemsize
        sub_mult = max(SUB, 32 // max(1, itemsize))   # f32:8 bf16:16 int8:32
        budget_rows = max(sub_mult, block_bytes // (LANE * itemsize))
        if budget_rows >= CHUNK_ROWS:
            budget_rows = (budget_rows // CHUNK_ROWS) * CHUNK_ROWS
        if rows >= budget_rows:
            block_rows = budget_rows
            chunk_rows = min(CHUNK_ROWS, block_rows)
        else:
            block_rows = pl.cdiv(rows, sub_mult) * sub_mult
            chunk_rows = block_rows if block_rows <= CHUNK_ROWS else CHUNK_ROWS
            if block_rows % chunk_rows != 0:
                block_rows = pl.cdiv(block_rows, chunk_rows) * chunk_rows

        num_blocks = pl.cdiv(rows, block_rows)
        num_cores = 2 if num_blocks >= 2 else 1   # v7x 2-TC split; no-op on 1-TC
        blocks_per_core = pl.cdiv(num_blocks, num_cores)

        def x_index_map(c, i):
            # Clamp so odd block counts never issue an out-of-bounds DMA; the
            # clamped (phantom) iteration is fully masked inside the kernel.
            return (jnp.minimum(c * blocks_per_core + i, num_blocks - 1), 0)

        kernel = functools.partial(
            _bce_sum_kernel, t=t, rows=rows, block_rows=block_rows,
            chunk_rows=chunk_rows, blocks_per_core=blocks_per_core,
            num_blocks=num_blocks, num_cores=num_cores)

        partials = pl.pallas_call(
            kernel,
            out_shape=jax.ShapeDtypeStruct((num_cores * SUB, LANE), jnp.float32),
            grid=(num_cores, blocks_per_core),
            in_specs=[pl.BlockSpec((block_rows, LANE), x_index_map)],
            out_specs=pl.BlockSpec((SUB, LANE), lambda c, i: (c, 0)),
            compiler_params=pltpu.CompilerParams(
                dimension_semantics=("parallel", "arbitrary"),
                vmem_limit_bytes=32 * 1024 * 1024),
        )(x2d)
        total = total + jnp.sum(partials)

    # mean reduction (default of nn.BCEWithLogitsLoss)
    return total / jnp.float32(n)


def _reference(prediction, is_real, prob=0.5):
    x = prediction.astype(jnp.float32)
    t = jnp.float32((1.0 if is_real else 0.0) * float(prob))
    loss = jnp.maximum(x, 0.0) - x * t + jnp.log1p(jnp.exp(-jnp.abs(x)))
    return jnp.mean(loss)


if __name__ == "__main__":
    key = jax.random.PRNGKey(0)
    k1, k2, k3 = jax.random.split(key, 3)

    # 1) NCHW discriminator logits, element count divisible by 128
    #    (fast path: no masking code is emitted at all).
    pred_a = jax.random.normal(k1, (2, 4, 16, 16), dtype=jnp.float32)
    # 2) Ragged element count (1960): exercises the wrapper lane-tail fold and
    #    the masked single-block (block_rows > rows) path.
    pred_b = jax.random.normal(k2, (2, 5, 14, 14), dtype=jnp.float32)
    # 3) Medium tensor with a small forced block budget: exercises multi-block
    #    accumulation, the 2-core "parallel" split, last-block row masking and
    #    the clamped phantom block.
    pred_c = jax.random.normal(k3, (2, 5, 59, 57), dtype=jnp.float32)

    outs, refs = [], []
    for pred, kwargs in ((pred_a, {}), (pred_b, {}),
                         (pred_c, {"block_bytes": 64 * 1024})):
        for is_real in (True, False):
            outs.append(bce_gan_loss(pred, is_real=is_real, prob=0.5, **kwargs))
            refs.append(_reference(pred, is_real, 0.5))
    outs = jax.block_until_ready(outs)

    for o, r in zip(outs, refs):
        assert jnp.allclose(o, r, rtol=1e-5, atol=1e-5), (o, r)

    print("KERNEL_OK")
</pallas_src>

<mosaic_0001>
module attributes {stable_mosaic.version = 11 : i64} {
  func.func @_bce_sum_kernel(%arg0: i32, %arg1: i32, %arg2: memref<16x128xf32, #tpu.memory_space<vmem>>, %arg3: memref<8x128xf32, #tpu.memory_space<vmem>>) attributes {dimension_semantics = [#tpu.dimension_semantics<parallel>, #tpu.dimension_semantics<arbitrary>], iteration_bounds = array<i64: 1, 1>, scalar_prefetch = 0 : i64, scratch_operands = 0 : i64, tpu.core_type = #tpu.core_type<tc>, window_params = [{transform_indices = @transform_0, window_bounds = array<i64: 16, 128>}, {transform_indices = @transform_1, window_bounds = array<i64: 8, 128>}]} {
    %c0_i32 = arith.constant 0 : i32
    %0 = arith.cmpi eq, %arg1, %c0_i32 : i32
    %1 = arith.extui %0 : i1 to i32
    %c0_i32_0 = arith.constant 0 : i32
    %2 = arith.cmpi ne, %1, %c0_i32_0 : i32
    scf.if %2 {
      %cst_10 = arith.constant 0.000000e+00 : f32
      %25 = vector.broadcast %cst_10 : f32 to vector<8x128xf32>
      %c0_11 = arith.constant 0 : index
      %c0_12 = arith.constant 0 : index
      %26 = vector.load %arg3[%c0_11, %c0_12] : memref<8x128xf32, #tpu.memory_space<vmem>>, vector<8x128xf32>
      tpu.vector_store %arg3[%c0_11, %c0_12], %25 {strides = array<i32>} : memref<8x128xf32, #tpu.memory_space<vmem>>, vector<8x128xf32>,
    } else {
    }
    %cst = arith.constant 0.000000e+00 : f32
    %3 = vector.broadcast %cst : f32 to vector<8x128xf32>
    %c0_i32_1 = arith.constant 0 : i32
    %c16_i32 = arith.constant 16 : i32
    %4 = arith.muli %c0_i32_1, %c16_i32 : i32
    %5 = tpu.assume_multiple %4, 16 : i32
    %6 = arith.index_cast %5 : i32 to index
    %c0 = arith.constant 0 : index
    %7 = vector.load %arg2[%6, %c0] : memref<16x128xf32, #tpu.memory_space<vmem>>, vector<16x128xf32>
    %cst_2 = arith.constant 0.000000e+00 : f32
    %8 = vector.broadcast %cst_2 : f32 to vector<16x128xf32>
    %9 = arith.maximumf %7, %8 : vector<16x128xf32>
    %10 = math.absf %7 : vector<16x128xf32>
    %cst_3 = arith.constant 0.000000e+00 : f32
    %11 = vector.broadcast %cst_3 : f32 to vector<16x128xf32>
    %12 = arith.subf %11, %10 : vector<16x128xf32>
    %13 = math.exp %12 : vector<16x128xf32>
    %14 = math.log1p %13 : vector<16x128xf32>
    %15 = arith.addf %9, %14 : vector<16x128xf32>
    %cst_4 = arith.constant 5.000000e-01 : f32
    %16 = vector.broadcast %cst_4 : f32 to vector<16x128xf32>
    %17 = arith.mulf %7, %16 : vector<16x128xf32>
    %18 = arith.subf %15, %17 : vector<16x128xf32>
    %19 = vector.shape_cast %18 : vector<16x128xf32> to vector<2x8x128xf32>
    %cst_5 = arith.constant dense<0.000000e+00> : vector<8x128xf32>
    %20 = vector.multi_reduction <add>, %19, %cst_5 [0] : vector<2x8x128xf32> to vector<8x128xf32>
    %21 = arith.addf %3, %20 : vector<8x128xf32>
    %c1_i32 = arith.constant 1 : i32
    %c0_6 = arith.constant 0 : index
    %c0_7 = arith.constant 0 : index
    %22 = vector.load %arg3[%c0_6, %c0_7] : memref<8x128xf32, #tpu.memory_space<vmem>>, vector<8x128xf32>
    %23 = arith.addf %22, %21 : vector<8x128xf32>
    %c0_8 = arith.constant 0 : index
    %c0_9 = arith.constant 0 : index
    %24 = vector.load %arg3[%c0_8, %c0_9] : memref<8x128xf32, #tpu.memory_space<vmem>>, vector<8x128xf32>
    tpu.vector_store %arg3[%c0_8, %c0_9], %23 {strides = array<i32>} : memref<8x128xf32, #tpu.memory_space<vmem>>, vector<8x128xf32>,
    return
  }
  func.func @transform_0(%arg0: i32, %arg1: i32) -> (i32, i32) {
    %c1_i32 = arith.constant 1 : i32
    %0 = arith.muli %arg0, %c1_i32 : i32
    %1 = arith.addi %0, %arg1 : i32
    %c0_i32 = arith.constant 0 : i32
    %2 = arith.minsi %1, %c0_i32 : i32
    %c0_i32_0 = arith.constant 0 : i32
    %c0_i32_1 = arith.constant 0 : i32
    return %2, %c0_i32_0 : i32, i32
  }
  func.func @transform_1(%arg0: i32, %arg1: i32) -> (i32, i32) {
    %c0_i32 = arith.constant 0 : i32
    %c0_i32_0 = arith.constant 0 : i32
    return %arg0, %c0_i32 : i32, i32
  }
}

</mosaic_0001>

<llo_original>
// kernel: bce_gan_loss.1
$region0: #{bce_gan_loss.1}
  #allocation0 [shape = 'u32[]', space=smem, size = 0x4, offset = 0x4, fixed_abs, tag = 'smem constant byte address 0x4 - core index']
  #allocation1 [shape = 'u32[144,128]{1,0:T(1,128)}', space=vmem, size = 0x12000, scoped, tag = 'internal scratch']
  %s0 = inlined_call_operand.vmem [shape: f32[16,128], index: 0, kind: input, shape index: {}]
  %s1 = inlined_call_operand.vmem [shape: f32[8,128], index: 1, kind: output, shape index: {}]
  %s2 = sld [smem:[#allocation0]]
  $region18: #{bce_gan_loss.1} parent=0
    _
  %s4 = ssub.s32 1, %s2
  %s5 = scalar_select 0, %s4, %s2
  // Predicated region
  $region2: #{bce_gan_loss.1} parent=0 // pred_check
    _
  $region3: #{bce_gan_loss.1} parent=0 // pred_check_branch
    %7 = sbr.rel (0) target = $region5
  $region4: #{bce_gan_loss.1} parent=0 // pred_region
    %s8 = sadd.s32 0, 0
    %p9 = scmp.lt.s32.totalorder %s8, 0
    %s10 = scalar_select %p9, %s8, 0
    %s11 = smul.u32 2, %s10
    %p12 = scmp.lt.s32.totalorder %s11, 1
    %s13 = scalar_select %p12, %s11, 1
    %s14 = smul.addr %s13, 8
    %s15 = scalar_lea.vmem %s0, %s14
    %s16 = sadd.s32 0, 0
    %p17 = scmp.lt.s32.totalorder %s16, 0
    %s18 = scalar_select %p17, %s16, 0
    %s19 = smul.u32 2, %s18
  $region5: #{bce_gan_loss.1} parent=0 // pred_fallthru
    _
  %s20 = sadd.s32 0, 0
  %p21 = scmp.lt.s32.totalorder %s20, 0
  %s22 = scalar_select %p21, %s20, 0
  %s23 = smul.u32 2, %s22
  %p24 = scmp.lt.s32.totalorder %s23, 1
  %s25 = scalar_select %p24, %s23, 1
  %s26 = smul.addr %s25, 8
  %s27 = scalar_lea.vmem %s0, %s26
  %s28 = sadd.s32 0, 0
  %p29 = scmp.lt.s32.totalorder %s28, 0
  %s30 = scalar_select %p29, %s28, 0
  %s31 = smul.u32 2, %s30
  %p32 = scmp.lt.s32.totalorder %s31, 1
  %s33 = scalar_select %p32, %s31, 1
  %s34 = smul.addr %s33, 8
  %s35 = scalar_lea.vmem %s0, %s34
  %s36 = sadd.s32 0, 0
  %p37 = scmp.lt.s32.totalorder %s36, 0
  %s38 = scalar_select %p37, %s36, 0
  %s39 = smul.u32 2, %s38
  %p40 = scmp.eq.s32.totalorder 0, 0
  // Predicated region
  $region6: #{bce_gan_loss.1} parent=0 // pred_check
    %p41 = pneg %p40
  $region7: #{bce_gan_loss.1} parent=0 // pred_check_branch
    %43 = sbr.rel (%p41) target = $region9
  $region8: #{bce_gan_loss.1} parent=0 // pred_region
    %44 = vst [vmem:[%s1] sm:$0xff] 0.0
  $region9: #{bce_gan_loss.1} parent=0 // pred_fallthru
    _
  %v45 = vld [vmem:[%s35] sm:$0xff]
  %v46 = vld [vmem:[%s35 + $0x8] sm:$0xff]
  %v47 = vmax.f32 %v45, 0.0
  %v48 = vmax.f32 %v46, 0.0
  %v49 = vand.u32 2147483647, %v45
  %v50 = vand.u32 2147483647, %v46
  %v51 = vsub.f32 0.0, %v49
  %v52 = vsub.f32 0.0, %v50
  %v53 = vmul.f32 %v51, 1.442695
  %v54 = vpow.pop %v53
  %v55 = vmul.f32 %v52, 1.442695
  %v56 = vpow.pop %v55
  %v57 = vadd.f32 %v54, 1.0
  %v58 = vlog2.pop %v57
  %v59 = vmul.f32 %v58, 0.6931472
  %v60 = vmul.f32 -0.5, %v54
  %v61 = vadd.f32 %v60, 1.0
  %v62 = vmul.f32 %v61, %v54
  %v63 = vand.u32 2147483647, %v54
  %vm64 = vcmp.lt.f32.partialorder %v63, 0.0004427343
  %v65 = vsel %vm64, %v62, %v59
  %v66 = vadd.f32 %v56, 1.0
  %v67 = vlog2.pop %v66
  %v68 = vmul.f32 %v67, 0.6931472
  %v69 = vmul.f32 -0.5, %v56
  %v70 = vadd.f32 %v69, 1.0
  %v71 = vmul.f32 %v70, %v56
  %v72 = vand.u32 2147483647, %v56
  %vm73 = vcmp.lt.f32.partialorder %v72, 0.0004427343
  %v74 = vsel %vm73, %v71, %v68
  %v75 = vadd.f32 %v47, %v65
  %v76 = vadd.f32 %v48, %v74
  %v77 = vmul.f32 %v45, 0.5
  %v78 = vmul.f32 %v46, 0.5
  %v79 = vsub.f32 %v75, %v77
  %v80 = vsub.f32 %v76, %v78
  %v81 = vadd.f32 %v79, %v80
  %v82 = vadd.f32 %v81, 0.0
  %v83 = vld [vmem:[%s1] sm:$0xff]
  %v84 = vadd.f32 %v83, %v82
  %85 = vst [vmem:[%s1] sm:$0xff] %v84
  // Predicated region
  $region10: #{bce_gan_loss.1} parent=0 // pred_check
    _
  $region11: #{bce_gan_loss.1} parent=0 // pred_check_branch
    %87 = sbr.rel (0) target = $region13
  $region12: #{bce_gan_loss.1} parent=0 // pred_region
    _
  $region13: #{bce_gan_loss.1} parent=0 // pred_fallthru
    _
  // Predicated region
  $region14: #{bce_gan_loss.1} parent=0 // pred_check
    _
  $region15: #{bce_gan_loss.1} parent=0 // pred_check_branch
    %89 = sbr.rel (0) target = $region17
  $region16: #{bce_gan_loss.1} parent=0 // pred_region
    _
  $region17: #{bce_gan_loss.1} parent=0 // pred_fallthru
    _

</llo_original>
